<compile_context>
chip_gen: v6e
topology: v6e:2x2x1
jax: 0.10.0
libtpu: 0.0.40
codegen_flags: <defaults>
</compile_context>

<pallas_src>
import functools

import jax
import jax.numpy as jnp
from jax.experimental import pallas as pl
from jax.experimental.pallas import tpu as pltpu

LANES = 128                      # lane-dense output slab width
VMEM_LIMIT_BYTES = 32 * 1024 * 1024   # raise v5e's 16 MiB scoped default; <= v7x physical
HEAD_MATMUL_DTYPE = jnp.float32  # set to jnp.bfloat16 at large B (f32 accumulate kept)


def mlp_kernel(x_ref, w1_ref, b1_ref, wh_ref, bh_ref, out_ref, *, n_action, head_dtype):
    x = x_ref[0]                           # [B, K_pad] f32 (states zero-padded to K=8)

    # ---- Hidden layer: Linear(n_state, 64) + ReLU, on the MXU (K padded to 8) ----
    h = jnp.dot(x, w1_ref[...], preferred_element_type=jnp.float32) + b1_ref[...]
    h = jnp.maximum(h, 0.0)                # [B, hidden]

    # ---- Fused actor + critic heads: one lane-dense [hidden, 128] matmul --------
    wh = wh_ref[...]
    hm = h
    if head_dtype != jnp.float32:          # optional bf16 operands, f32 accumulate
        hm = h.astype(head_dtype)
        wh = wh.astype(head_dtype)
    logits = jnp.dot(hm, wh, preferred_element_type=jnp.float32) + bh_ref[...]
    # logits: [B, 128]; lanes 0:n_action = actor logits, lane n_action = critic,
    # remaining lanes exactly zero (zero-padded weights/biases).

    # ---- Softmax over dim=0 (batch axis of this slice), as nn.Softmax(dim=0) ----
    # Column-wise normalization, so actor columns are unaffected by the critic
    # and padded columns.
    m = jnp.max(logits, axis=0, keepdims=True)
    e = jnp.exp(logits - m)
    # approx reciprocal runs on the EUP slot (free); switch to exact division if
    # PPO log-prob bias at ~1e-3 rel error ever matters.
    sm = e * pl.reciprocal(jnp.sum(e, axis=0, keepdims=True), approx=True)

    # Per-lane select: actor lanes take the softmax, critic (and padding) lanes
    # keep the raw linear output.  Mask is a single (1, 128) iota/compare,
    # broadcast over rows.  One unmasked lane-dense store.
    lane = jax.lax.broadcasted_iota(jnp.int32, (1, logits.shape[1]), 1)
    out_ref[0] = jnp.where(lane < n_action, sm, logits)


@functools.partial(jax.jit, static_argnames=("n_action",))
def mlp_forward(x, w1t, b1, wht, bh, *, n_action):
    """x: [S, B, n_state] f32 (S independent rollout slices).
    Returns (actor [S, B, n_action], critic [S, B, 1])."""
    S, B, n_state = x.shape
    k_pad, hidden = w1t.shape

    # Zero-pad states to the MXU-aligned contraction width (fused into this jit).
    if n_state < k_pad:
        x = jnp.pad(x, ((0, 0), (0, 0), (0, k_pad - n_state)))

    # Per-step VMEM estimate (double-buffered x/out blocks, resident weights,
    # live f32 temporaries) checked against the *scoped* VMEM limit we request.
    est_vmem = (
        2 * B * k_pad * 4
        + 2 * B * LANES * 4
        + 2 * (k_pad * hidden + hidden + hidden * LANES + LANES) * 4
        + B * (hidden + 4 * LANES) * 4
    )
    assert est_vmem < VMEM_LIMIT_BYTES, (
        f"per-slice VMEM estimate {est_vmem} exceeds scoped limit; reduce B per slice")

    cost = pl.CostEstimate(
        flops=2 * S * B * (k_pad * hidden + hidden * LANES),
        transcendentals=S * B * LANES + S * LANES,
        bytes_accessed=(S * B * k_pad * 4
                        + (k_pad * hidden + hidden + hidden * LANES + LANES) * 4
                        + S * B * LANES * 4),
    )

    slab = pl.pallas_call(
        functools.partial(mlp_kernel, n_action=n_action, head_dtype=HEAD_MATMUL_DTYPE),
        out_shape=jax.ShapeDtypeStruct((S, B, LANES), jnp.float32),
        grid=(S,),
        in_specs=[
            pl.BlockSpec((1, B, k_pad), lambda s: (s, 0, 0)),
            # Weights: constant block index -> resident in VMEM, DMA'd once per call.
            pl.BlockSpec((k_pad, hidden), lambda s: (0, 0)),
            pl.BlockSpec((1, hidden), lambda s: (0, 0)),
            pl.BlockSpec((hidden, LANES), lambda s: (0, 0)),
            pl.BlockSpec((1, LANES), lambda s: (0, 0)),
        ],
        out_specs=pl.BlockSpec((1, B, LANES), lambda s: (s, 0, 0)),
        compiler_params=pltpu.CompilerParams(
            dimension_semantics=("parallel",),      # slices are independent -> megacore
            vmem_limit_bytes=VMEM_LIMIT_BYTES,
        ),
        cost_estimate=cost,
    )(x, w1t, b1, wht, bh)

    # Slice inside the same jit so XLA fuses the reads of the lane-dense slab.
    actor = slab[:, :, :n_action]
    critic = slab[:, :, n_action:n_action + 1]
    return actor, critic


def init_torch_like_params(key, n_state, n_action, hidden=64):
    """PyTorch-Linear-style params (W: [out, in], b: [out]) with default init."""
    ks = jax.random.split(key, 6)

    def lin(kw, kb, fan_in, fan_out):
        bound = 1.0 / jnp.sqrt(jnp.float32(fan_in))
        w = jax.random.uniform(kw, (fan_out, fan_in), jnp.float32, -bound, bound)
        b = jax.random.uniform(kb, (fan_out,), jnp.float32, -bound, bound)
        return w, b

    w1, b1 = lin(ks[0], ks[1], n_state, hidden)     # layers[0]: Linear(n_state, 64)
    wa, ba = lin(ks[2], ks[3], hidden, n_action)    # actor:     Linear(64, n_action)
    wc, bc = lin(ks[4], ks[5], hidden, 1)           # critic:    Linear(64, 1)
    return dict(w1=w1, b1=b1, wa=wa, ba=ba, wc=wc, bc=bc)


def prepare_kernel_params(p):
    """Pre-transpose, zero-pad layer-1 K to 8 (MXU-aligned), fuse actor+critic
    heads, zero-pad the fused head to a 128-lane slab."""
    hidden, n_state = p["w1"].shape
    n_action = p["wa"].shape[0]
    assert n_action + 1 <= LANES, "fused head must fit in one 128-lane slab"

    k_pad = max(8, ((n_state + 7) // 8) * 8)
    w1t = jnp.zeros((k_pad, hidden), jnp.float32).at[:n_state, :].set(p["w1"].T)

    wh = jnp.concatenate([p["wa"].T, p["wc"].T], axis=1)        # [hidden, n_action+1]
    wht = jnp.zeros((hidden, LANES), jnp.float32).at[:, :n_action + 1].set(wh)
    bh = jnp.concatenate([p["ba"], p["bc"]], axis=0)            # [n_action+1]
    bhp = jnp.zeros((1, LANES), jnp.float32).at[0, :n_action + 1].set(bh)

    return {
        "w1t": w1t,                          # [k_pad, hidden]  (zero-padded K)
        "b1": p["b1"].reshape(1, hidden),    # [1, hidden]
        "wht": wht,                          # [hidden, 128]    (fused, padded)
        "bh": bhp,                           # [1, 128]         (fused, padded)
        "n_action": n_action,
    }


def mlp_reference(x, p):
    """Pure-JAX reference with the original (unfused) PyTorch-style params.
    x: [S, B, n_state]; softmax over the batch axis of each slice (dim=0)."""
    h = jnp.maximum(jnp.einsum("sbk,hk->sbh", x, p["w1"]) + p["b1"], 0.0)
    actor_logits = jnp.einsum("sbh,ah->sba", h, p["wa"]) + p["ba"]
    actor = jax.nn.softmax(actor_logits, axis=1)                # nn.Softmax(dim=0)
    critic = jnp.einsum("sbh,ch->sbc", h, p["wc"]) + p["bc"]
    return actor, critic


if __name__ == "__main__":
    key = jax.random.PRNGKey(0)
    k_param, k_x = jax.random.split(key)

    # CartPole-like: 4 states, 2 actions.  S=4 rollout slices of B=128 states are
    # processed by a single pallas_call (the dispatch/weight-DMA amortization the
    # perf review asked for).
    S, B, n_state, n_action = 4, 128, 4, 2
    torch_params = init_torch_like_params(k_param, n_state, n_action)
    params = prepare_kernel_params(torch_params)
    x = jax.random.normal(k_x, (S, B, n_state), jnp.float32)

    actor_out, critic_out = mlp_forward(
        x, params["w1t"], params["b1"], params["wht"], params["bh"],
        n_action=params["n_action"])
    actor_out = jax.block_until_ready(actor_out)
    critic_out = jax.block_until_ready(critic_out)

    actor_ref, critic_ref = mlp_reference(x, torch_params)
    assert actor_out.shape == (S, B, n_action) and critic_out.shape == (S, B, 1)
    # approx reciprocal in the softmax denominator -> slightly looser tolerance
    assert jnp.allclose(actor_out, actor_ref, atol=2e-3, rtol=2e-3)
    assert jnp.allclose(critic_out, critic_ref, atol=1e-4, rtol=1e-4)

    print("KERNEL_OK")
</pallas_src>

<mosaic_0001>
module attributes {stable_mosaic.version = 11 : i64} {
  func.func @mlp_kernel(%arg0: i32, %arg1: memref<1x128x8xf32, #tpu.memory_space<vmem>>, %arg2: memref<8x64xf32, #tpu.memory_space<vmem>>, %arg3: memref<1x64xf32, #tpu.memory_space<vmem>>, %arg4: memref<64x128xf32, #tpu.memory_space<vmem>>, %arg5: memref<1x128xf32, #tpu.memory_space<vmem>>, %arg6: memref<1x128x128xf32, #tpu.memory_space<vmem>>) attributes {dimension_semantics = [#tpu.dimension_semantics<parallel>], iteration_bounds = array<i64: 4>, scalar_prefetch = 0 : i64, scratch_operands = 0 : i64, tpu.core_type = #tpu.core_type<tc>, window_params = [{transform_indices = @transform_0, window_bounds = array<i64: 1, 128, 8>}, {pipeline_mode = #tpu.pipeline_mode<synchronous>, transform_indices = @transform_1, window_bounds = array<i64: 8, 64>}, {pipeline_mode = #tpu.pipeline_mode<synchronous>, transform_indices = @transform_2, window_bounds = array<i64: 1, 64>}, {pipeline_mode = #tpu.pipeline_mode<synchronous>, transform_indices = @transform_3, window_bounds = array<i64: 64, 128>}, {pipeline_mode = #tpu.pipeline_mode<synchronous>, transform_indices = @transform_4, window_bounds = array<i64: 1, 128>}, {transform_indices = @transform_5, window_bounds = array<i64: 1, 128, 128>}]} {
    %c0 = arith.constant 0 : index
    %c0_0 = arith.constant 0 : index
    %c0_1 = arith.constant 0 : index
    %0 = vector.load %arg1[%c0, %c0_0, %c0_1] : memref<1x128x8xf32, #tpu.memory_space<vmem>>, vector<1x128x8xf32>
    %1 = vector.shape_cast %0 : vector<1x128x8xf32> to vector<128x8xf32>
    %c0_2 = arith.constant 0 : index
    %c0_3 = arith.constant 0 : index
    %2 = vector.load %arg2[%c0_2, %c0_3] : memref<8x64xf32, #tpu.memory_space<vmem>>, vector<8x64xf32>
    %cst = arith.constant dense<0.000000e+00> : vector<128x64xf32>
    %3 = tpu.matmul %1, %2, %cst {dimension_numbers = #tpu.dot_dimension_numbers<[1], [0], [0], [1], [0, 0, 1, 1], [], []>} : vector<128x8xf32>, vector<8x64xf32>, vector<128x64xf32> -> vector<128x64xf32>
    %c0_4 = arith.constant 0 : index
    %c0_5 = arith.constant 0 : index
    %4 = vector.load %arg3[%c0_4, %c0_5] : memref<1x64xf32, #tpu.memory_space<vmem>>, vector<1x64xf32>
    %5 = vector.broadcast %4 : vector<1x64xf32> to vector<128x64xf32>
    %6 = arith.addf %3, %5 : vector<128x64xf32>
    %cst_6 = arith.constant 0.000000e+00 : f32
    %7 = vector.broadcast %cst_6 : f32 to vector<128x64xf32>
    %8 = arith.maximumf %6, %7 : vector<128x64xf32>
    %c0_7 = arith.constant 0 : index
    %c0_8 = arith.constant 0 : index
    %9 = vector.load %arg4[%c0_7, %c0_8] : memref<64x128xf32, #tpu.memory_space<vmem>>, vector<64x128xf32>
    %cst_9 = arith.constant dense<0.000000e+00> : vector<128x128xf32>
    %10 = tpu.matmul %8, %9, %cst_9 {dimension_numbers = #tpu.dot_dimension_numbers<[1], [0], [0], [1], [0, 0, 1, 1], [], []>} : vector<128x64xf32>, vector<64x128xf32>, vector<128x128xf32> -> vector<128x128xf32>
    %c0_10 = arith.constant 0 : index
    %c0_11 = arith.constant 0 : index
    %11 = vector.load %arg5[%c0_10, %c0_11] : memref<1x128xf32, #tpu.memory_space<vmem>>, vector<1x128xf32>
    %12 = vector.broadcast %11 : vector<1x128xf32> to vector<128x128xf32>
    %13 = arith.addf %10, %12 : vector<128x128xf32>
    %cst_12 = arith.constant dense<0xFF800000> : vector<128xf32>
    %14 = vector.multi_reduction <maximumf>, %13, %cst_12 [0] : vector<128x128xf32> to vector<128xf32>
    %15 = vector.shape_cast %14 : vector<128xf32> to vector<1x128xf32>
    %16 = vector.broadcast %15 : vector<1x128xf32> to vector<128x128xf32>
    %17 = arith.subf %13, %16 : vector<128x128xf32>
    %18 = math.exp %17 : vector<128x128xf32>
    %cst_13 = arith.constant dense<0.000000e+00> : vector<128xf32>
    %19 = vector.multi_reduction <add>, %18, %cst_13 [0] : vector<128x128xf32> to vector<128xf32>
    %20 = vector.shape_cast %19 : vector<128xf32> to vector<1x128xf32>
    %21 = tpu.reciprocal %20 {approx = true} : vector<1x128xf32> -> vector<1x128xf32>
    %22 = vector.broadcast %21 : vector<1x128xf32> to vector<128x128xf32>
    %23 = arith.mulf %18, %22 : vector<128x128xf32>
    %24 = tpu.iota {dimensions = array<i32: 1>} : vector<1x128xi32>
    %c2_i32 = arith.constant 2 : i32
    %25 = vector.broadcast %c2_i32 : i32 to vector<1x128xi32>
    %26 = arith.cmpi slt, %24, %25 : vector<1x128xi32>
    %27 = vector.shape_cast %26 : vector<1x128xi1> to vector<1x128xi1>
    %28 = vector.broadcast %27 : vector<1x128xi1> to vector<128x128xi1>
    %29 = arith.select %28, %23, %13 : vector<128x128xi1>, vector<128x128xf32>
    %c0_14 = arith.constant 0 : index
    %c0_15 = arith.constant 0 : index
    %c0_16 = arith.constant 0 : index
    %30 = vector.load %arg6[%c0_14, %c0_15, %c0_16] : memref<1x128x128xf32, #tpu.memory_space<vmem>>, vector<1x128x128xf32>
    %31 = vector.shape_cast %30 : vector<1x128x128xf32> to vector<128x128xf32>
    %32 = vector.shape_cast %29 : vector<128x128xf32> to vector<1x128x128xf32>
    tpu.vector_store %arg6[%c0_14, %c0_15, %c0_16], %32 {strides = array<i32>} : memref<1x128x128xf32, #tpu.memory_space<vmem>>, vector<1x128x128xf32>,
    return
  }
  func.func @transform_0(%arg0: i32) -> (i32, i32, i32) {
    %c0_i32 = arith.constant 0 : i32
    %c0_i32_0 = arith.constant 0 : i32
    %c0_i32_1 = arith.constant 0 : i32
    return %arg0, %c0_i32, %c0_i32_0 : i32, i32, i32
  }
  func.func @transform_1(%arg0: i32) -> (i32, i32) {
    %c0_i32 = arith.constant 0 : i32
    %c0_i32_0 = arith.constant 0 : i32
    %c0_i32_1 = arith.constant 0 : i32
    return %c0_i32, %c0_i32_0 : i32, i32
  }
  func.func @transform_2(%arg0: i32) -> (i32, i32) {
    %c0_i32 = arith.constant 0 : i32
    %c0_i32_0 = arith.constant 0 : i32
    %c0_i32_1 = arith.constant 0 : i32
    return %c0_i32, %c0_i32_0 : i32, i32
  }
  func.func @transform_3(%arg0: i32) -> (i32, i32) {
    %c0_i32 = arith.constant 0 : i32
    %c0_i32_0 = arith.constant 0 : i32
    %c0_i32_1 = arith.constant 0 : i32
    return %c0_i32, %c0_i32_0 : i32, i32
  }
  func.func @transform_4(%arg0: i32) -> (i32, i32) {
    %c0_i32 = arith.constant 0 : i32
    %c0_i32_0 = arith.constant 0 : i32
    %c0_i32_1 = arith.constant 0 : i32
    return %c0_i32, %c0_i32_0 : i32, i32
  }
  func.func @transform_5(%arg0: i32) -> (i32, i32, i32) {
    %c0_i32 = arith.constant 0 : i32
    %c0_i32_0 = arith.constant 0 : i32
    %c0_i32_1 = arith.constant 0 : i32
    return %arg0, %c0_i32, %c0_i32_0 : i32, i32, i32
  }
}

</mosaic_0001>

<llo_original>
// kernel: mlp_forward.1
$region0: #{mlp_forward.1}
  #allocation0 [shape = 'u32[]', space=smem, size = 0x4, offset = 0x4, fixed_abs, tag = 'smem constant byte address 0x4 - core index']
  #allocation1 [shape = 'u32[144,128]{1,0:T(1,128)}', space=vmem, size = 0x12000, scoped, tag = 'internal scratch']
  %s0 = inlined_call_operand.vmem [shape: f32[4,128,8], index: 0, kind: input, shape index: {}]
  %s1 = inlined_call_operand.vmem [shape: f32[8,64], index: 1, kind: input, shape index: {}]
  %s2 = inlined_call_operand.vmem [shape: f32[1,64], index: 2, kind: input, shape index: {}]
  %s3 = inlined_call_operand.vmem [shape: f32[64,128], index: 3, kind: input, shape index: {}]
  %s4 = inlined_call_operand.vmem [shape: f32[1,128], index: 4, kind: input, shape index: {}]
  %s5 = inlined_call_operand.vmem [shape: f32[4,128,128], index: 5, kind: output, shape index: {}]
  %s6 = sld [smem:[#allocation0]]
  $region53: #{mlp_forward.1} parent=0
    _
  %s8 = ssub.s32 1, %s6
  %s9 = scalar_select 0, %s8, %s6
  loop: start=0, step=1, limit=6
  $region2: #{mlp_forward.1} parent=0 // loop_pre_header
    _
  $region3: #{mlp_forward.1} parent=0 // loop_header
    %s11 = sphi 0, %s15
    %p12 = scmp.ge.s32.totalorder %s11, 6
    %s21 = sphi 0, %s23
    %s24 = sphi 0, %s21
    %s25 = sphi 0, %s24
    %s41 = sphi 0, %s25
    %s45 = sphi 0, %s45
    %s47 = sphi 0, %s45
    %s48 = sphi 0, %s47
    %s62 = sphi 0, %s48
    %s66 = sphi 0, %s66
    %s68 = sphi 0, %s66
    %s69 = sphi 0, %s68
    %s83 = sphi 0, %s69
    %s87 = sphi 0, %s87
    %s89 = sphi 0, %s87
    %s90 = sphi 0, %s89
    %s104 = sphi 0, %s90
    %s108 = sphi 0, %s108
    %s110 = sphi 0, %s108
    %s111 = sphi 0, %s110
    %s125 = sphi 0, %s111
    %s131 = sphi 0, %s133
    %s134 = sphi 0, %s131
    %s135 = sphi 0, %s134
    %s151 = sphi 0, %s135
  $region4: #{mlp_forward.1} parent=0 // loop_header_branch
    %14 = sbr.rel (%p12) target = $region8
  $region5: #{mlp_forward.1} parent=0 // loop_body
    %s16 = ssub.s32 %s11, 1
    %s17 = ssub.s32 %s11, 2
    %s18 = sadd.s32 %s11, 1
    %s19 = ssub.s32 %s11, %s18
    %p20 = scmp.eq.s32.totalorder %s19, 0
    %s22 = sadd.s32 %s21, 1
    %s23 = scalar_select %p20, %s21, %s22
    %p26 = pneg %p20
    %p27 = scmp.eq.s32.totalorder %s11, 3
    %p28 = por %p26, %p27
    %p29 = scmp.ne.s32.totalorder %s21, %s24
    %p30 = scmp.eq.s32.totalorder %s11, 0
    %p31 = por %p29, %p30
    %p32 = scmp.ne.s32.totalorder %s21, %s24
    %p33 = scmp.eq.s32.totalorder %s16, 3
    %p34 = por %p32, %p33
    %p35 = scmp.ne.s32.totalorder %s24, %s25
    %p36 = scmp.eq.s32.totalorder %s16, 0
    %p37 = por %p35, %p36
    %p38 = scmp.ne.s32.totalorder %s24, %s25
    %p39 = scmp.eq.s32.totalorder %s17, 3
    %p40 = por %p38, %p39
    %p42 = scmp.ne.s32.totalorder %s25, %s41
    %p43 = scmp.eq.s32.totalorder %s17, 0
    %p44 = por %p42, %p43
    %s46 = sadd.s32 %s45, 1
    %p49 = scmp.eq.s32.totalorder %s11, 3
    %p50 = scmp.ne.s32.totalorder %s45, %s47
    %p51 = scmp.eq.s32.totalorder %s11, 0
    %p52 = por %p50, %p51
    %p53 = scmp.ne.s32.totalorder %s45, %s47
    %p54 = scmp.eq.s32.totalorder %s16, 3
    %p55 = por %p53, %p54
    %p56 = scmp.ne.s32.totalorder %s47, %s48
    %p57 = scmp.eq.s32.totalorder %s16, 0
    %p58 = por %p56, %p57
    %p59 = scmp.ne.s32.totalorder %s47, %s48
    %p60 = scmp.eq.s32.totalorder %s17, 3
    %p61 = por %p59, %p60
    %p63 = scmp.ne.s32.totalorder %s48, %s62
    %p64 = scmp.eq.s32.totalorder %s17, 0
    %p65 = por %p63, %p64
    %s67 = sadd.s32 %s66, 1
    %p70 = scmp.eq.s32.totalorder %s11, 3
    %p71 = scmp.ne.s32.totalorder %s66, %s68
    %p72 = scmp.eq.s32.totalorder %s11, 0
    %p73 = por %p71, %p72
    %p74 = scmp.ne.s32.totalorder %s66, %s68
    %p75 = scmp.eq.s32.totalorder %s16, 3
    %p76 = por %p74, %p75
    %p77 = scmp.ne.s32.totalorder %s68, %s69
    %p78 = scmp.eq.s32.totalorder %s16, 0
    %p79 = por %p77, %p78
    %p80 = scmp.ne.s32.totalorder %s68, %s69
    %p81 = scmp.eq.s32.totalorder %s17, 3
    %p82 = por %p80, %p81
    %p84 = scmp.ne.s32.totalorder %s69, %s83
    %p85 = scmp.eq.s32.totalorder %s17, 0
    %p86 = por %p84, %p85
    %s88 = sadd.s32 %s87, 1
    %p91 = scmp.eq.s32.totalorder %s11, 3
    %p92 = scmp.ne.s32.totalorder %s87, %s89
    %p93 = scmp.eq.s32.totalorder %s11, 0
    %p94 = por %p92, %p93
    %p95 = scmp.ne.s32.totalorder %s87, %s89
    %p96 = scmp.eq.s32.totalorder %s16, 3
    %p97 = por %p95, %p96
    %p98 = scmp.ne.s32.totalorder %s89, %s90
    %p99 = scmp.eq.s32.totalorder %s16, 0
    %p100 = por %p98, %p99
    %p101 = scmp.ne.s32.totalorder %s89, %s90
    %p102 = scmp.eq.s32.totalorder %s17, 3
    %p103 = por %p101, %p102
    %p105 = scmp.ne.s32.totalorder %s90, %s104
    %p106 = scmp.eq.s32.totalorder %s17, 0
    %p107 = por %p105, %p106
    %s109 = sadd.s32 %s108, 1
    %p112 = scmp.eq.s32.totalorder %s11, 3
    %p113 = scmp.ne.s32.totalorder %s108, %s110
    %p114 = scmp.eq.s32.totalorder %s11, 0
    %p115 = por %p113, %p114
    %p116 = scmp.ne.s32.totalorder %s108, %s110
    %p117 = scmp.eq.s32.totalorder %s16, 3
    %p118 = por %p116, %p117
    %p119 = scmp.ne.s32.totalorder %s110, %s111
    %p120 = scmp.eq.s32.totalorder %s16, 0
    %p121 = por %p119, %p120
    %p122 = scmp.ne.s32.totalorder %s110, %s111
    %p123 = scmp.eq.s32.totalorder %s17, 3
    %p124 = por %p122, %p123
    %p126 = scmp.ne.s32.totalorder %s111, %s125
    %p127 = scmp.eq.s32.totalorder %s17, 0
    %p128 = por %p126, %p127
    %s129 = ssub.s32 %s11, %s18
    %p130 = scmp.eq.s32.totalorder %s129, 0
    %s132 = sadd.s32 %s131, 1
    %s133 = scalar_select %p130, %s131, %s132
    %p136 = pneg %p130
    %p137 = scmp.eq.s32.totalorder %s11, 3
    %p138 = por %p136, %p137
    %p139 = scmp.ne.s32.totalorder %s131, %s134
    %p140 = scmp.eq.s32.totalorder %s11, 0
    %p141 = por %p139, %p140
    %p142 = scmp.ne.s32.totalorder %s131, %s134
    %p143 = scmp.eq.s32.totalorder %s16, 3
    %p144 = por %p142, %p143
    %p145 = scmp.ne.s32.totalorder %s134, %s135
    %p146 = scmp.eq.s32.totalorder %s16, 0
    %p147 = por %p145, %p146
    %p148 = scmp.ne.s32.totalorder %s134, %s135
    %p149 = scmp.eq.s32.totalorder %s17, 3
    %p150 = por %p148, %p149
    %p152 = scmp.ne.s32.totalorder %s135, %s151
    %p153 = scmp.eq.s32.totalorder %s17, 0
    %p154 = por %p152, %p153
    %p155 = scmp.le.s32.totalorder 1, %s11
    %p156 = scmp.lt.s32.totalorder %s11, 5
    %p157 = pnand %p155, %p156
    %p158 = pneg %p157
    // Predicated region
    $region9: #{mlp_forward.1} parent=5 // pred_check
      _
    $region10: #{mlp_forward.1} parent=5 // pred_check_branch
      %160 = sbr.rel (%p157) target = $region12
    $region11: #{mlp_forward.1} parent=5 // pred_region
      %s161 = ssub.s32 %s11, 1
      // Predicated region
      $region13: #{mlp_forward.1} parent=11 // pred_check
        %p162 = pneg %p58
      $region14: #{mlp_forward.1} parent=11 // pred_check_branch
        %164 = sbr.rel (%p162) target = $region16
      $region15: #{mlp_forward.1} parent=11 // pred_region
        _
      $region16: #{mlp_forward.1} parent=11 // pred_fallthru
        _
      // Predicated region
      $region17: #{mlp_forward.1} parent=11 // pred_check
        %p165 = pneg %p79
      $region18: #{mlp_forward.1} parent=11 // pred_check_branch
        %167 = sbr.rel (%p165) target = $region20
      $region19: #{mlp_forward.1} parent=11 // pred_region
        _
      $region20: #{mlp_forward.1} parent=11 // pred_fallthru
        _
      // Predicated region
      $region21: #{mlp_forward.1} parent=11 // pred_check
        %p168 = pneg %p100
      $region22: #{mlp_forward.1} parent=11 // pred_check_branch
        %170 = sbr.rel (%p168) target = $region24
      $region23: #{mlp_forward.1} parent=11 // pred_region
        _
      $region24: #{mlp_forward.1} parent=11 // pred_fallthru
        _
      // Predicated region
      $region25: #{mlp_forward.1} parent=11 // pred_check
        %p171 = pneg %p121
      $region26: #{mlp_forward.1} parent=11 // pred_check_branch
        %173 = sbr.rel (%p171) target = $region28
      $region27: #{mlp_forward.1} parent=11 // pred_region
        _
      $region28: #{mlp_forward.1} parent=11 // pred_fallthru
        _
    $region12: #{mlp_forward.1} parent=5 // pred_fallthru
      _
    %p174 = scmp.lt.s32.totalorder %s11, 4
    // Predicated region
    $region29: #{mlp_forward.1} parent=5 // pred_check
      %p175 = pneg %p174
    $region30: #{mlp_forward.1} parent=5 // pred_check_branch
      %177 = sbr.rel (%p175) target = $region32
    $region31: #{mlp_forward.1} parent=5 // pred_region
      // Predicated region
      $region33: #{mlp_forward.1} parent=31 // pred_check
        %p178 = pneg %p31
      $region34: #{mlp_forward.1} parent=31 // pred_check_branch
        %180 = sbr.rel (%p178) target = $region36
      $region35: #{mlp_forward.1} parent=31 // pred_region
        %p181 = scmp.lt.s32.totalorder %s11, 3
        %s182 = scalar_select %p181, %s11, 3
        %s183 = smul.addr %s182, 16
        %s184 = smul.addr %s183, 8
        %s185 = scalar_lea.vmem %s0, %s184
      $region36: #{mlp_forward.1} parent=31 // pred_fallthru
        _
    $region32: #{mlp_forward.1} parent=5 // pred_fallthru
      _
    %p186 = scmp.le.s32.totalorder 1, %s11
    %p187 = scmp.lt.s32.totalorder %s11, 5
    %p188 = pnand %p186, %p187
    %p189 = pneg %p188
    // Predicated region
    $region37: #{mlp_forward.1} parent=5 // pred_check
      _
    $region38: #{mlp_forward.1} parent=5 // pred_check_branch
      %191 = sbr.rel (%p188) target = $region40
    $region39: #{mlp_forward.1} parent=5 // pred_region
      %s192 = ssub.s32 %s11, 1
      %p193 = scmp.lt.s32.totalorder %s16, 3
      %s194 = scalar_select %p193, %s16, 3
      %s195 = smul.addr %s194, 16
      %s196 = smul.addr %s195, 8
      %s197 = scalar_lea.vmem %s0, %s196
      %p198 = pneg %p37
      %p199 = pneg %p34
      %p200 = pneg %p58
      %p201 = pneg %p55
      %p202 = pneg %p79
      %p203 = pneg %p76
      %p204 = pneg %p100
      %p205 = pneg %p97
      %p206 = pneg %p121
      %p207 = pneg %p118
      %p208 = pneg %p147
      %p209 = pneg %p144
      %p210 = scmp.lt.s32.totalorder %s16, 3
      %s211 = scalar_select %p210, %s16, 3
      %s212 = smul.addr %s211, 16
      %s213 = smul.addr %s212, 8
      %s214 = scalar_lea.vmem %s5, %s213
      %p215 = scmp.lt.s32.totalorder %s16, 3
      %s216 = scalar_select %p215, %s16, 3
      %s217 = smul.addr %s216, 16
      %s218 = smul.addr %s217, 8
      %s219 = scalar_lea.vmem %s0, %s218
      %p220 = scmp.lt.s32.totalorder %s16, 3
      %s221 = scalar_select %p220, %s16, 3
      %s222 = smul.addr %s221, 16
      %s223 = smul.addr %s222, 8
      %s224 = scalar_lea.vmem %s5, %s223
      %v225 = vld [vmem:[%s219] sm:$0xff]
      %v226 = vld [vmem:[%s219 + $0x8] sm:$0xff]
      %v227 = vld [vmem:[%s219 + $0x10] sm:$0xff]
      %v228 = vld [vmem:[%s219 + $0x18] sm:$0xff]
      %v229 = vld [vmem:[%s219 + $0x20] sm:$0xff]
      %v230 = vld [vmem:[%s219 + $0x28] sm:$0xff]
      %v231 = vld [vmem:[%s219 + $0x30] sm:$0xff]
      %v232 = vld [vmem:[%s219 + $0x38] sm:$0xff]
      %v233 = vld [vmem:[%s219 + $0x40] sm:$0xff]
      %v234 = vld [vmem:[%s219 + $0x48] sm:$0xff]
      %v235 = vld [vmem:[%s219 + $0x50] sm:$0xff]
      %v236 = vld [vmem:[%s219 + $0x58] sm:$0xff]
      %v237 = vld [vmem:[%s219 + $0x60] sm:$0xff]
      %v238 = vld [vmem:[%s219 + $0x68] sm:$0xff]
      %v239 = vld [vmem:[%s219 + $0x70] sm:$0xff]
      %v240 = vld [vmem:[%s219 + $0x78] sm:$0xff]
      %v241 = vld [vmem:[%s1] sm:$0xff]
      %v242 = vld [vmem:[%s2] sm:$0x1]
      %v244 = vlaneseq
      %v245 = vshrl.u32 %v244, 7
      %v246 = vsub.s32 0, %v245
      %v247 = vrot.slane %v242, %v246
      %vm249 = vcmask 64512
      %v251 = vsel %vm249, %v225, 0
      %v254 = vsel %vm249, %v226, 0
      %v257 = vsel %vm249, %v227, 0
      %v260 = vsel %vm249, %v228, 0
      %v263 = vsel %vm249, %v229, 0
      %v266 = vsel %vm249, %v230, 0
      %v269 = vsel %vm249, %v231, 0
      %v272 = vsel %vm249, %v232, 0
      %v275 = vsel %vm249, %v233, 0
      %v278 = vsel %vm249, %v234, 0
      %v281 = vsel %vm249, %v235, 0
      %v284 = vsel %vm249, %v236, 0
      %v287 = vsel %vm249, %v237, 0
      %v290 = vsel %vm249, %v238, 0
      %v293 = vsel %vm249, %v239, 0
      %v296 = vsel %vm249, %v240, 0
      %298 = vmatprep.subr.mxu0 0.0
      %299 = vmatpush1.msra.mxu0 0.0
      %300 = vmatprep.subr.mxu0 0.0
      %301 = vmatpush1.msra.mxu0 0.0
      %302 = vmatprep.subr.mxu0 0.0
      %303 = vmatpush1.msra.mxu0 0.0
      %304 = vmatprep.subr.mxu0 0.0
      %305 = vmatpush1.msra.mxu0 0.0
      %306 = vmatprep.subr.mxu0 0.0
      %307 = vmatpush1.msra.mxu0 0.0
      %308 = vmatprep.subr.mxu0 0.0
      %309 = vmatpush1.msra.mxu0 0.0
      %310 = vmatprep.subr.mxu0 0.0
      %311 = vmatpush1.msra.mxu0 0.0
      %312 = vmatprep.subr.mxu0 0.0
      %313 = vmatpush1.msra.mxu0 0.0
      %314 = vmatprep.subr.mxu0 0.0
      %315 = vmatpush1.msra.mxu0 0.0
      %316 = vmatprep.subr.mxu0 0.0
      %317 = vmatpush1.msra.mxu0 0.0
      %318 = vmatprep.subr.mxu0 0.0
      %319 = vmatpush1.msra.mxu0 0.0
      %320 = vmatprep.subr.mxu0 0.0
      %321 = vmatpush1.msra.mxu0 0.0
      %322 = vmatprep.subr.mxu0 0.0
      %323 = vmatpush1.msra.mxu0 0.0
      %324 = vmatprep.subr.mxu0 0.0
      %325 = vmatpush1.msra.mxu0 0.0
      %326 = vmatprep.subr.mxu0 0.0
      %327 = vmatpush1.msra.mxu0 0.0
      %328 = vmatprep.subr.mxu0 0.0
      %329 = vmatpush1.msra.mxu0 %v241
      %330 = vmatprep.subr.mxu0 0.0
      %331 = vmatpush2.msra.mxu0 0.0
      %332 = vmatprep.subr.mxu0 0.0
      %333 = vmatpush2.msra.mxu0 0.0
      %334 = vmatprep.subr.mxu0 0.0
      %335 = vmatpush2.msra.mxu0 0.0
      %336 = vmatprep.subr.mxu0 0.0
      %337 = vmatpush2.msra.mxu0 0.0
      %338 = vmatprep.subr.mxu0 0.0
      %339 = vmatpush2.msra.mxu0 0.0
      %340 = vmatprep.subr.mxu0 0.0
      %341 = vmatpush2.msra.mxu0 0.0
      %342 = vmatprep.subr.mxu0 0.0
      %343 = vmatpush2.msra.mxu0 0.0
      %344 = vmatprep.subr.mxu0 0.0
      %345 = vmatpush2.msra.mxu0 0.0
      %346 = vmatprep.subr.mxu0 0.0
      %347 = vmatpush2.msra.mxu0 0.0
      %348 = vmatprep.subr.mxu0 0.0
      %349 = vmatpush2.msra.mxu0 0.0
      %350 = vmatprep.subr.mxu0 0.0
      %351 = vmatpush2.msra.mxu0 0.0
      %352 = vmatprep.subr.mxu0 0.0
      %353 = vmatpush2.msra.mxu0 0.0
      %354 = vmatprep.subr.mxu0 0.0
      %355 = vmatpush2.msra.mxu0 0.0
      %356 = vmatprep.subr.mxu0 0.0
      %357 = vmatpush2.msra.mxu0 0.0
      %358 = vmatprep.subr.mxu0 0.0
      %359 = vmatpush2.msra.mxu0 0.0
      %360 = vmatprep.subr.mxu0 0.0
      %361 = vmatpush2.msra.mxu0 0.0
      %362 = vmatprep.mubr.f32.mxu0 0.0
      %363 = vmatmul.mubr.f32.gmra.mxu0 %v251
      %v364 = vpop.f32.mrf.mxu0
      %v365 = vadd.f32 %v247, %v364
      %v366 = vpop.f32.mrf.mxu0
      %367 = vmatprep.mubr.f32.mxu0 0.0
      %368 = vmatmul.mubr.f32.gmra.mxu0 %v254
      %v369 = vpop.f32.mrf.mxu0
      %v370 = vadd.f32 %v247, %v369
      %v371 = vpop.f32.mrf.mxu0
      %372 = vmatprep.mubr.f32.mxu0 0.0
      %373 = vmatmul.mubr.f32.gmra.mxu0 %v257
      %v374 = vpop.f32.mrf.mxu0
      %v375 = vadd.f32 %v247, %v374
      %v376 = vpop.f32.mrf.mxu0
      %377 = vmatprep.mubr.f32.mxu0 0.0
      %378 = vmatmul.mubr.f32.gmra.mxu0 %v260
      %v379 = vpop.f32.mrf.mxu0
      %v380 = vadd.f32 %v247, %v379
      %v381 = vpop.f32.mrf.mxu0
      %382 = vmatprep.mubr.f32.mxu0 0.0
      %383 = vmatmul.mubr.f32.gmra.mxu0 %v263
      %v384 = vpop.f32.mrf.mxu0
      %v385 = vadd.f32 %v247, %v384
      %v386 = vpop.f32.mrf.mxu0
      %387 = vmatprep.mubr.f32.mxu0 0.0
      %388 = vmatmul.mubr.f32.gmra.mxu0 %v266
      %v389 = vpop.f32.mrf.mxu0
      %v390 = vadd.f32 %v247, %v389
      %v391 = vpop.f32.mrf.mxu0
      %392 = vmatprep.mubr.f32.mxu0 0.0
      %393 = vmatmul.mubr.f32.gmra.mxu0 %v269
      %v394 = vpop.f32.mrf.mxu0
      %v395 = vadd.f32 %v247, %v394
      %v396 = vpop.f32.mrf.mxu0
      %397 = vmatprep.mubr.f32.mxu0 0.0
      %398 = vmatmul.mubr.f32.gmra.mxu0 %v272
      %v399 = vpop.f32.mrf.mxu0
      %v400 = vadd.f32 %v247, %v399
      %v401 = vpop.f32.mrf.mxu0
      %402 = vmatprep.mubr.f32.mxu0 0.0
      %403 = vmatmul.mubr.f32.gmra.mxu0 %v275
      %v404 = vpop.f32.mrf.mxu0
      %v405 = vadd.f32 %v247, %v404
      %v406 = vpop.f32.mrf.mxu0
      %407 = vmatprep.mubr.f32.mxu0 0.0
      %408 = vmatmul.mubr.f32.gmra.mxu0 %v278
      %v409 = vpop.f32.mrf.mxu0
      %v410 = vadd.f32 %v247, %v409
      %v411 = vpop.f32.mrf.mxu0
      %412 = vmatprep.mubr.f32.mxu0 0.0
      %413 = vmatmul.mubr.f32.gmra.mxu0 %v281
      %v414 = vpop.f32.mrf.mxu0
      %v415 = vadd.f32 %v247, %v414
      %v416 = vpop.f32.mrf.mxu0
      %417 = vmatprep.mubr.f32.mxu0 0.0
      %418 = vmatmul.mubr.f32.gmra.mxu0 %v284
      %v419 = vpop.f32.mrf.mxu0
      %v420 = vadd.f32 %v247, %v419
      %v421 = vpop.f32.mrf.mxu0
      %422 = vmatprep.mubr.f32.mxu0 0.0
      %423 = vmatmul.mubr.f32.gmra.mxu0 %v287
      %v424 = vpop.f32.mrf.mxu0
      %v425 = vadd.f32 %v247, %v424
      %v426 = vpop.f32.mrf.mxu0
      %427 = vmatprep.mubr.f32.mxu0 0.0
      %428 = vmatmul.mubr.f32.gmra.mxu0 %v290
      %v429 = vpop.f32.mrf.mxu0
      %v430 = vadd.f32 %v247, %v429
      %v431 = vpop.f32.mrf.mxu0
      %432 = vmatprep.mubr.f32.mxu0 0.0
      %433 = vmatmul.mubr.f32.gmra.mxu0 %v293
      %v434 = vpop.f32.mrf.mxu0
      %v435 = vadd.f32 %v247, %v434
      %v436 = vpop.f32.mrf.mxu0
      %437 = vmatprep.mubr.f32.mxu0 0.0
      %438 = vmatmul.mubr.f32.gmra.mxu0 %v296
      %v439 = vpop.f32.mrf.mxu0
      %v440 = vadd.f32 %v247, %v439
      %v441 = vpop.f32.mrf.mxu0
      %442 = vdwg.mxu0
      %v443 = vmax.f32 %v365, 0.0
      %v444 = vmax.f32 %v370, 0.0
      %v445 = vmax.f32 %v375, 0.0
      %v446 = vmax.f32 %v380, 0.0
      %v447 = vmax.f32 %v385, 0.0
      %v448 = vmax.f32 %v390, 0.0
      %v449 = vmax.f32 %v395, 0.0
      %v450 = vmax.f32 %v400, 0.0
      %v451 = vmax.f32 %v405, 0.0
      %v452 = vmax.f32 %v410, 0.0
      %v453 = vmax.f32 %v415, 0.0
      %v454 = vmax.f32 %v420, 0.0
      %v455 = vmax.f32 %v425, 0.0
      %v456 = vmax.f32 %v430, 0.0
      %v457 = vmax.f32 %v435, 0.0
      %v458 = vmax.f32 %v440, 0.0
      %v459 = vld [vmem:[%s3] sm:$0xff]
      %v460 = vld [vmem:[%s3 + $0x8] sm:$0xff]
      %v461 = vld [vmem:[%s3 + $0x10] sm:$0xff]
      %v462 = vld [vmem:[%s3 + $0x18] sm:$0xff]
      %v463 = vld [vmem:[%s3 + $0x20] sm:$0xff]
      %v464 = vld [vmem:[%s3 + $0x28] sm:$0xff]
      %v465 = vld [vmem:[%s3 + $0x30] sm:$0xff]
      %v466 = vld [vmem:[%s3 + $0x38] sm:$0xff]
      %v467 = vld [vmem:[%s4] sm:$0x1]
      %v469 = vlaneseq
      %v470 = vshrl.u32 %v469, 7
      %v471 = vsub.s32 0, %v470
      %v472 = vrot.slane %v467, %v471
      %vm474 = vcmask 523264
      %v476 = vsel %vm474, %v443, 0
      %v479 = vsel %vm474, %v444, 0
      %v482 = vsel %vm474, %v445, 0
      %v485 = vsel %vm474, %v446, 0
      %v488 = vsel %vm474, %v447, 0
      %v491 = vsel %vm474, %v448, 0
      %v494 = vsel %vm474, %v449, 0
      %v497 = vsel %vm474, %v450, 0
      %v500 = vsel %vm474, %v451, 0
      %v503 = vsel %vm474, %v452, 0
      %v506 = vsel %vm474, %v453, 0
      %v509 = vsel %vm474, %v454, 0
      %v512 = vsel %vm474, %v455, 0
      %v515 = vsel %vm474, %v456, 0
      %v518 = vsel %vm474, %v457, 0
      %v521 = vsel %vm474, %v458, 0
      %523 = vmatprep.subr.mxu0 0.0
      %524 = vmatpush1.msra.mxu0 0.0
      %525 = vmatprep.subr.mxu0 0.0
      %526 = vmatpush1.msra.mxu0 0.0
      %527 = vmatprep.subr.mxu0 0.0
      %528 = vmatpush1.msra.mxu0 0.0
      %529 = vmatprep.subr.mxu0 0.0
      %530 = vmatpush1.msra.mxu0 0.0
      %531 = vmatprep.subr.mxu0 0.0
      %532 = vmatpush1.msra.mxu0 0.0
      %533 = vmatprep.subr.mxu0 0.0
      %534 = vmatpush1.msra.mxu0 0.0
      %535 = vmatprep.subr.mxu0 0.0
      %536 = vmatpush1.msra.mxu0 0.0
      %537 = vmatprep.subr.mxu0 0.0
      %538 = vmatpush1.msra.mxu0 0.0
      %539 = vmatprep.subr.mxu0 0.0
      %540 = vmatpush1.msra.mxu0 %v466
      %541 = vmatprep.subr.mxu0 0.0
      %542 = vmatpush1.msra.mxu0 %v465
      %543 = vmatprep.subr.mxu0 0.0
      %544 = vmatpush1.msra.mxu0 %v464
      %545 = vmatprep.subr.mxu0 0.0
      %546 = vmatpush1.msra.mxu0 %v463
      %547 = vmatprep.subr.mxu0 0.0
      %548 = vmatpush1.msra.mxu0 %v462
      %549 = vmatprep.subr.mxu0 0.0
      %550 = vmatpush1.msra.mxu0 %v461
      %551 = vmatprep.subr.mxu0 0.0
      %552 = vmatpush1.msra.mxu0 %v460
      %553 = vmatprep.subr.mxu0 0.0
      %554 = vmatpush1.msra.mxu0 %v459
      %555 = vmatprep.subr.mxu0 0.0
      %556 = vmatpush2.msra.mxu0 0.0
      %557 = vmatprep.subr.mxu0 0.0
      %558 = vmatpush2.msra.mxu0 0.0
      %559 = vmatprep.subr.mxu0 0.0
      %560 = vmatpush2.msra.mxu0 0.0
      %561 = vmatprep.subr.mxu0 0.0
      %562 = vmatpush2.msra.mxu0 0.0
      %563 = vmatprep.subr.mxu0 0.0
      %564 = vmatpush2.msra.mxu0 0.0
      %565 = vmatprep.subr.mxu0 0.0
      %566 = vmatpush2.msra.mxu0 0.0
      %567 = vmatprep.subr.mxu0 0.0
      %568 = vmatpush2.msra.mxu0 0.0
      %569 = vmatprep.subr.mxu0 0.0
      %570 = vmatpush2.msra.mxu0 0.0
      %571 = vmatprep.subr.mxu0 0.0
      %572 = vmatpush2.msra.mxu0 0.0
      %573 = vmatprep.subr.mxu0 0.0
      %574 = vmatpush2.msra.mxu0 0.0
      %575 = vmatprep.subr.mxu0 0.0
      %576 = vmatpush2.msra.mxu0 0.0
      %577 = vmatprep.subr.mxu0 0.0
      %578 = vmatpush2.msra.mxu0 0.0
      %579 = vmatprep.subr.mxu0 0.0
      %580 = vmatpush2.msra.mxu0 0.0
      %581 = vmatprep.subr.mxu0 0.0
      %582 = vmatpush2.msra.mxu0 0.0
      %583 = vmatprep.subr.mxu0 0.0
      %584 = vmatpush2.msra.mxu0 0.0
      %585 = vmatprep.subr.mxu0 0.0
      %586 = vmatpush2.msra.mxu0 0.0
      %587 = vmatprep.mubr.f32.mxu0 0.0
      %588 = vmatmul.mubr.f32.gmra.mxu0 %v476
      %v589 = vpop.f32.mrf.mxu0
      %v590 = vadd.f32 %v472, %v589
      %v591 = vpop.f32.mrf.mxu0
      %592 = vmatprep.mubr.f32.mxu0 0.0
      %593 = vmatmul.mubr.f32.gmra.mxu0 %v479
      %v594 = vpop.f32.mrf.mxu0
      %v595 = vadd.f32 %v472, %v594
      %v596 = vpop.f32.mrf.mxu0
      %597 = vmatprep.mubr.f32.mxu0 0.0
      %598 = vmatmul.mubr.f32.gmra.mxu0 %v482
      %v599 = vpop.f32.mrf.mxu0
      %v600 = vadd.f32 %v472, %v599
      %v601 = vpop.f32.mrf.mxu0
      %602 = vmatprep.mubr.f32.mxu0 0.0
      %603 = vmatmul.mubr.f32.gmra.mxu0 %v485
      %v604 = vpop.f32.mrf.mxu0
      %v605 = vadd.f32 %v472, %v604
      %v606 = vpop.f32.mrf.mxu0
      %607 = vmatprep.mubr.f32.mxu0 0.0
      %608 = vmatmul.mubr.f32.gmra.mxu0 %v488
      %v609 = vpop.f32.mrf.mxu0
      %v610 = vadd.f32 %v472, %v609
      %v611 = vpop.f32.mrf.mxu0
      %612 = vmatprep.mubr.f32.mxu0 0.0
      %613 = vmatmul.mubr.f32.gmra.mxu0 %v491
      %v614 = vpop.f32.mrf.mxu0
      %v615 = vadd.f32 %v472, %v614
      %v616 = vpop.f32.mrf.mxu0
      %617 = vmatprep.mubr.f32.mxu0 0.0
      %618 = vmatmul.mubr.f32.gmra.mxu0 %v494
      %v619 = vpop.f32.mrf.mxu0
      %v620 = vadd.f32 %v472, %v619
      %v621 = vpop.f32.mrf.mxu0
      %622 = vmatprep.mubr.f32.mxu0 0.0
      %623 = vmatmul.mubr.f32.gmra.mxu0 %v497
      %v624 = vpop.f32.mrf.mxu0
      %v625 = vadd.f32 %v472, %v624
      %v626 = vpop.f32.mrf.mxu0
      %627 = vmatprep.mubr.f32.mxu0 0.0
      %628 = vmatmul.mubr.f32.gmra.mxu0 %v500
      %v629 = vpop.f32.mrf.mxu0
      %v630 = vadd.f32 %v472, %v629
      %v631 = vpop.f32.mrf.mxu0
      %632 = vmatprep.mubr.f32.mxu0 0.0
      %633 = vmatmul.mubr.f32.gmra.mxu0 %v503
      %v634 = vpop.f32.mrf.mxu0
      %v635 = vadd.f32 %v472, %v634
      %v636 = vpop.f32.mrf.mxu0
      %637 = vmatprep.mubr.f32.mxu0 0.0
      %638 = vmatmul.mubr.f32.gmra.mxu0 %v506
      %v639 = vpop.f32.mrf.mxu0
      %v640 = vadd.f32 %v472, %v639
      %v641 = vpop.f32.mrf.mxu0
      %642 = vmatprep.mubr.f32.mxu0 0.0
      %643 = vmatmul.mubr.f32.gmra.mxu0 %v509
      %v644 = vpop.f32.mrf.mxu0
      %v645 = vadd.f32 %v472, %v644
      %v646 = vpop.f32.mrf.mxu0
      %647 = vmatprep.mubr.f32.mxu0 0.0
      %648 = vmatmul.mubr.f32.gmra.mxu0 %v512
      %v649 = vpop.f32.mrf.mxu0
      %v650 = vadd.f32 %v472, %v649
      %v651 = vpop.f32.mrf.mxu0
      %652 = vmatprep.mubr.f32.mxu0 0.0
      %653 = vmatmul.mubr.f32.gmra.mxu0 %v515
      %v654 = vpop.f32.mrf.mxu0
      %v655 = vadd.f32 %v472, %v654
      %v656 = vpop.f32.mrf.mxu0
      %657 = vmatprep.mubr.f32.mxu0 0.0
      %658 = vmatmul.mubr.f32.gmra.mxu0 %v518
      %v659 = vpop.f32.mrf.mxu0
      %v660 = vadd.f32 %v472, %v659
      %v661 = vpop.f32.mrf.mxu0
      %662 = vmatprep.mubr.f32.mxu0 0.0
      %663 = vmatmul.mubr.f32.gmra.mxu0 %v521
      %v664 = vpop.f32.mrf.mxu0
      %v665 = vadd.f32 %v472, %v664
      %v666 = vpop.f32.mrf.mxu0
      %667 = vdwg.mxu0
      %v668 = vmax.f32 %v590, %v610
      %v669 = vmax.f32 %v595, %v615
      %v670 = vmax.f32 %v600, %v620
      %v671 = vmax.f32 %v605, %v625
      %v672 = vmax.f32 %v668, %v630
      %v673 = vmax.f32 %v669, %v635
      %v674 = vmax.f32 %v670, %v640
      %v675 = vmax.f32 %v671, %v645
      %v676 = vmax.f32 %v672, %v650
      %v677 = vmax.f32 %v673, %v655
      %v678 = vmax.f32 %v674, %v660
      %v679 = vmax.f32 %v675, %v665
      %v680 = vmax.f32 %v676, %v677
      %v681 = vmax.f32 %v678, %v679
      %v682 = vmax.f32 %v680, %v681
      %v683 = vrot.slane %v682, 4
      %v684 = vmax.f32 %v682, %v683
      %v685 = vrot.slane %v684, 2
      %v686 = vmax.f32 %v684, %v685
      %v687 = vrot.slane %v686, 1
      %v688 = vmax.f32 %v686, %v687
      %v689 = vsub.f32 %v590, %v688
      %v690 = vsub.f32 %v595, %v688
      %v691 = vsub.f32 %v600, %v688
      %v692 = vsub.f32 %v605, %v688
      %v693 = vsub.f32 %v610, %v688
      %v694 = vsub.f32 %v615, %v688
      %v695 = vsub.f32 %v620, %v688
      %v696 = vsub.f32 %v625, %v688
      %v697 = vsub.f32 %v630, %v688
      %v698 = vsub.f32 %v635, %v688
      %v699 = vsub.f32 %v640, %v688
      %v700 = vsub.f32 %v645, %v688
      %v701 = vsub.f32 %v650, %v688
      %v702 = vsub.f32 %v655, %v688
      %v703 = vsub.f32 %v660, %v688
      %v704 = vsub.f32 %v665, %v688
      %v705 = vmul.f32 %v689, 1.442695
      %v706 = vpow.pop %v705
      %v707 = vmul.f32 %v690, 1.442695
      %v708 = vpow.pop %v707
      %v709 = vmul.f32 %v691, 1.442695
      %v710 = vpow.pop %v709
      %v711 = vmul.f32 %v692, 1.442695
      %v712 = vpow.pop %v711
      %v713 = vmul.f32 %v693, 1.442695
      %v714 = vpow.pop %v713
      %v715 = vmul.f32 %v694, 1.442695
      %v716 = vpow.pop %v715
      %v717 = vmul.f32 %v695, 1.442695
      %v718 = vpow.pop %v717
      %v719 = vmul.f32 %v696, 1.442695
      %v720 = vpow.pop %v719
      %v721 = vmul.f32 %v697, 1.442695
      %v722 = vpow.pop %v721
      %v723 = vmul.f32 %v698, 1.442695
      %v724 = vpow.pop %v723
      %v725 = vmul.f32 %v699, 1.442695
      %v726 = vpow.pop %v725
      %v727 = vmul.f32 %v700, 1.442695
      %v728 = vpow.pop %v727
      %v729 = vmul.f32 %v701, 1.442695
      %v730 = vpow.pop %v729
      %v731 = vmul.f32 %v702, 1.442695
      %v732 = vpow.pop %v731
      %v733 = vmul.f32 %v703, 1.442695
      %v734 = vpow.pop %v733
      %v735 = vmul.f32 %v704, 1.442695
      %v736 = vpow.pop %v735
      %v737 = vadd.f32 %v706, %v708
      %v738 = vadd.f32 %v737, %v710
      %v739 = vadd.f32 %v738, %v712
      %v740 = vadd.f32 %v739, %v714
      %v741 = vadd.f32 %v740, %v716
      %v742 = vadd.f32 %v741, %v718
      %v743 = vadd.f32 %v742, %v720
      %v744 = vadd.f32 %v743, %v722
      %v745 = vadd.f32 %v744, %v724
      %v746 = vadd.f32 %v745, %v726
      %v747 = vadd.f32 %v746, %v728
      %v748 = vadd.f32 %v747, %v730
      %v749 = vadd.f32 %v748, %v732
      %v750 = vadd.f32 %v749, %v734
      %v751 = vadd.f32 %v750, %v736
      %v752 = vrot.slane %v751, 4
      %v753 = vadd.f32 %v751, %v752
      %v754 = vrot.slane %v753, 2
      %v755 = vadd.f32 %v753, %v754
      %v756 = vrot.slane %v755, 1
      %v757 = vadd.f32 %v755, %v756
      %v758 = vrcp.pop %v757
      %v759 = vmul.f32 %v706, %v758
      %v760 = vmul.f32 %v708, %v758
      %v761 = vmul.f32 %v710, %v758
      %v762 = vmul.f32 %v712, %v758
      %v763 = vmul.f32 %v714, %v758
      %v764 = vmul.f32 %v716, %v758
      %v765 = vmul.f32 %v718, %v758
      %v766 = vmul.f32 %v720, %v758
      %v767 = vmul.f32 %v722, %v758
      %v768 = vmul.f32 %v724, %v758
      %v769 = vmul.f32 %v726, %v758
      %v770 = vmul.f32 %v728, %v758
      %v771 = vmul.f32 %v730, %v758
      %v772 = vmul.f32 %v732, %v758
      %v773 = vmul.f32 %v734, %v758
      %v774 = vmul.f32 %v736, %v758
      %v775 = vlaneseq
      %v776 = vand.u32 %v775, 127
      %vm777 = vcmp.lt.s32.totalorder %v776, 2
      %v778 = vsel %vm777, 1, 0
      %vm779 = vcmp.eq.s32.totalorder %v778, 1
      %v780 = vsel %vm779, %v759, %v590
      %v781 = vsel %vm779, %v760, %v595
      %v782 = vsel %vm779, %v761, %v600
      %v783 = vsel %vm779, %v762, %v605
      %v784 = vsel %vm779, %v763, %v610
      %v785 = vsel %vm779, %v764, %v615
      %v786 = vsel %vm779, %v765, %v620
      %v787 = vsel %vm779, %v766, %v625
      %v788 = vsel %vm779, %v767, %v630
      %v789 = vsel %vm779, %v768, %v635
      %v790 = vsel %vm779, %v769, %v640
      %v791 = vsel %vm779, %v770, %v645
      %v792 = vsel %vm779, %v771, %v650
      %v793 = vsel %vm779, %v772, %v655
      %v794 = vsel %vm779, %v773, %v660
      %v795 = vsel %vm779, %v774, %v665
      %796 = vst [vmem:[%s224] sm:$0xff] %v780
      %797 = vst [vmem:[%s224 + $0x8] sm:$0xff] %v781
      %798 = vst [vmem:[%s224 + $0x10] sm:$0xff] %v782
      %799 = vst [vmem:[%s224 + $0x18] sm:$0xff] %v783
      %800 = vst [vmem:[%s224 + $0x20] sm:$0xff] %v784
      %801 = vst [vmem:[%s224 + $0x28] sm:$0xff] %v785
      %802 = vst [vmem:[%s224 + $0x30] sm:$0xff] %v786
      %803 = vst [vmem:[%s224 + $0x38] sm:$0xff] %v787
      %804 = vst [vmem:[%s224 + $0x40] sm:$0xff] %v788
      %805 = vst [vmem:[%s224 + $0x48] sm:$0xff] %v789
      %806 = vst [vmem:[%s224 + $0x50] sm:$0xff] %v790
      %807 = vst [vmem:[%s224 + $0x58] sm:$0xff] %v791
      %808 = vst [vmem:[%s224 + $0x60] sm:$0xff] %v792
      %809 = vst [vmem:[%s224 + $0x68] sm:$0xff] %v793
      %810 = vst [vmem:[%s224 + $0x70] sm:$0xff] %v794
      %811 = vst [vmem:[%s224 + $0x78] sm:$0xff] %v795
      %p812 = scmp.lt.s32.totalorder %s16, 3
      %s813 = scalar_select %p812, %s16, 3
      %s814 = smul.addr %s813, 16
      %s815 = smul.addr %s814, 8
      %s816 = scalar_lea.vmem %s5, %s815
      // Predicated region
      $region41: #{mlp_forward.1} parent=39 // pred_check
        %p817 = pneg %p144
      $region42: #{mlp_forward.1} parent=39 // pred_check_branch
        %819 = sbr.rel (%p817) target = $region44
      $region43: #{mlp_forward.1} parent=39 // pred_region
        _
      $region44: #{mlp_forward.1} parent=39 // pred_fallthru
        _
    $region40: #{mlp_forward.1} parent=5 // pred_fallthru
      _
    %p820 = scmp.le.s32.totalorder 2, %s11
    // Predicated region
    $region45: #{mlp_forward.1} parent=5 // pred_check
      %p821 = pneg %p820
    $region46: #{mlp_forward.1} parent=5 // pred_check_branch
      %823 = sbr.rel (%p821) target = $region48
    $region47: #{mlp_forward.1} parent=5 // pred_region
      %s824 = ssub.s32 %s11, 2
      // Predicated region
      $region49: #{mlp_forward.1} parent=47 // pred_check
        %p825 = pneg %p150
      $region50: #{mlp_forward.1} parent=47 // pred_check_branch
        %827 = sbr.rel (%p825) target = $region52
      $region51: #{mlp_forward.1} parent=47 // pred_region
        %p828 = scmp.lt.s32.totalorder %s17, 3
        %s829 = scalar_select %p828, %s17, 3
        %s830 = smul.addr %s829, 16
        %s831 = smul.addr %s830, 8
        %s832 = scalar_lea.vmem %s5, %s831
      $region52: #{mlp_forward.1} parent=47 // pred_fallthru
        _
    $region48: #{mlp_forward.1} parent=5 // pred_fallthru
      _
  $region6: #{mlp_forward.1} parent=0 // loop_footer
    %s15 = sadd.s32 1, %s11
  $region7: #{mlp_forward.1} parent=0 // loop_footer_branch
    %10 = sbr.rel target = $region3
  $region8: #{mlp_forward.1} parent=0 // loop_exit
    _

</llo_original>
